<compile_context>
chip_gen: v7x
topology: tpu7x:2x2x1
jax: 0.10.0
libtpu: 0.0.40
codegen_flags: <defaults>
</compile_context>

<pallas_src>
import functools

import numpy as np
import jax
import jax.numpy as jnp
from jax.experimental import pallas as pl
from jax.experimental.pallas import tpu as pltpu

EPSILON = float(np.finfo(np.float32).tiny)   # matches the torch module's EPSILON


def subset_operator_kernel(scores_ref, gumbel_ref, out_ref, *, k, inv_tau):
    # scores_ref / gumbel_ref / out_ref: (block_b, N) f32.  Writes khot only
    # (no k-fold broadcast inside the kernel).
    s = scores_ref[...] + gumbel_ref[...]
    eps = jnp.float32(EPSILON)

    def row_softmax(x):
        m = jnp.max(x, axis=-1, keepdims=True)             # XLU cross-lane reduce
        e = jnp.exp(x - m)                                  # EUP
        denom = jnp.sum(e, axis=-1, keepdims=True)          # XLU
        # One approximate reciprocal per row (EUP, (block_b, 1)) + one Newton step
        # (2 VALU ops on the same small column) instead of an N-wide f32 divide.
        r = pl.reciprocal(denom, approx=True)
        r = r * (2.0 - denom * r)                           # refine to ~f32 precision
        return e * r                                        # VPU multiply

    def scale(x):
        # tau is a static Python float; skip the op entirely when tau == 1.0.
        return x * inv_tau if inv_tau != 1.0 else x

    # Iteration 0 peeled: onehot == 0 -> khot_mask == 1 -> log(1) == 0.
    onehot = row_softmax(scale(s))
    khot = onehot

    # k is a small static constant -> fully unrolled relaxed-top-k sweep.
    for _ in range(1, k):
        khot_mask = jnp.maximum(1.0 - onehot, eps)
        s = s + jnp.log(khot_mask)                          # EUP
        onehot = row_softmax(scale(s))
        khot = khot + onehot

    out_ref[...] = khot                                     # lane-dense full-width vst


def _choose_block_b(B, N):
    """VMEM-aware row-tile size.

    Per-step footprint ~ 40 bytes/row/element: 3 pipelined (block_b, N) f32 arrays
    (2 inputs + 1 output) x 2 double-buffers, plus ~4 live f32 temps (s, onehot,
    khot, e).  Keep it under ~24 MiB so it fits every generation (v7x: 64 MiB
    physical / 32 MiB default scoped VMEM).  Prefer a multiple of 8 sublanes that
    divides B and leaves >= 2 grid steps (megacore on v7x)."""
    budget = 24 * 1024 * 1024
    cap = max(8, (budget // (40 * N)) // 8 * 8)
    multi = [d for d in range(8, B, 8) if B % d == 0 and d <= cap]
    if multi:
        return max(multi)      # biggest aligned divisor that still gives >= 2 steps
    return B                   # tiny/odd batch: whole batch in one full-dim block


def subset_operator(scores, gumbel, k, tau=1.0, block_b=None):
    """scores, gumbel: (B, N) float32.  Returns (B, k, N) float32 (hard=False path).

    The kernel produces khot as (B, N); the k-fold broadcast is done in the wrapper
    (free to fuse downstream), cutting kernel HBM writeback by a factor of k."""
    B, N = scores.shape
    if block_b is None:
        block_b = _choose_block_b(B, N)
    assert B % block_b == 0, (B, block_b)
    grid = (B // block_b,)

    # Double-buffered in/out tiles + live temps; clamp the limit to [32, 48] MiB so
    # it is valid on v5e/v6e (128 MiB) and v7x (64 MiB physical).
    est_bytes = 40 * block_b * N
    vmem_limit = int(min(48 * 1024 * 1024, max(32 * 1024 * 1024, 2 * est_bytes)))

    kernel = functools.partial(subset_operator_kernel, k=int(k), inv_tau=1.0 / float(tau))

    khot = pl.pallas_call(
        kernel,
        out_shape=jax.ShapeDtypeStruct((B, N), jnp.float32),
        grid_spec=pltpu.PrefetchScalarGridSpec(
            num_scalar_prefetch=0,
            grid=grid,
            in_specs=[
                pl.BlockSpec((block_b, N), lambda b: (b, 0)),   # scores rows
                pl.BlockSpec((block_b, N), lambda b: (b, 0)),   # gumbel noise rows
            ],
            out_specs=pl.BlockSpec((block_b, N), lambda b: (b, 0)),
        ),
        compiler_params=pltpu.CompilerParams(
            dimension_semantics=("parallel",),
            vmem_limit_bytes=vmem_limit,
        ),
    )(scores, gumbel)

    # res[:, None, :].repeat([1, k, 1]) — broadcast outside the kernel.
    return jnp.broadcast_to(khot[:, None, :], (B, k, N))


def subset_operator_ref(scores, gumbel, k, tau=1.0):
    """Pure-JAX reference mirroring the PyTorch forward (hard=False), exact math."""
    s = scores + gumbel
    khot = jnp.zeros_like(s)
    onehot = jnp.zeros_like(s)
    for _ in range(k):
        khot_mask = jnp.maximum(1.0 - onehot, jnp.float32(EPSILON))
        s = s + jnp.log(khot_mask)
        onehot = jax.nn.softmax(s / tau, axis=1)
        khot = khot + onehot
    return jnp.broadcast_to(khot[:, None, :], (s.shape[0], k, s.shape[1]))


if __name__ == "__main__":
    B, N, K = 8, 256, 4          # small: 8 score rows of 256 candidates, k=4
    TAU = 1.0

    key = jax.random.PRNGKey(0)
    k_scores, k_gumbel = jax.random.split(key)
    scores = jax.random.normal(k_scores, (B, N), jnp.float32)
    gumbel = jax.random.gumbel(k_gumbel, (B, N), jnp.float32)  # Gumbel(0,1) sample

    out = jax.block_until_ready(subset_operator(scores, gumbel, K, TAU))
    ref = jax.block_until_ready(subset_operator_ref(scores, gumbel, K, TAU))

    assert out.shape == (B, K, N), out.shape
    max_err = float(jnp.max(jnp.abs(out - ref)))
    # Row-reciprocal (approx vrcp + one Newton step) instead of per-element divide:
    # agreement with the exact reference stays at a few e-4 worst case.
    assert jnp.allclose(out, ref, atol=5e-3, rtol=5e-3), max_err
    # each softmax sums to 1, so every (row, copy) of khot sums to k
    row_sums = jnp.sum(out, axis=-1)
    assert jnp.allclose(row_sums, K, atol=1e-2), float(jnp.max(jnp.abs(row_sums - K)))
    print("KERNEL_OK")
</pallas_src>

<mosaic_0001>
module attributes {stable_mosaic.version = 11 : i64} {
  func.func @subset_operator_kernel(%arg0: i32, %arg1: memref<8x256xf32, #tpu.memory_space<vmem>>, %arg2: memref<8x256xf32, #tpu.memory_space<vmem>>, %arg3: memref<8x256xf32, #tpu.memory_space<vmem>>) attributes {dimension_semantics = [#tpu.dimension_semantics<parallel>], iteration_bounds = array<i64: 1>, scalar_prefetch = 0 : i64, scratch_operands = 0 : i64, tpu.core_type = #tpu.core_type<tc>, window_params = [{transform_indices = @transform_0, window_bounds = array<i64: 8, 256>}, {transform_indices = @transform_1, window_bounds = array<i64: 8, 256>}, {transform_indices = @transform_2, window_bounds = array<i64: 8, 256>}]} {
    %c0 = arith.constant 0 : index
    %c0_0 = arith.constant 0 : index
    %0 = vector.load %arg1[%c0, %c0_0] : memref<8x256xf32, #tpu.memory_space<vmem>>, vector<8x256xf32>
    %c0_1 = arith.constant 0 : index
    %c0_2 = arith.constant 0 : index
    %1 = vector.load %arg2[%c0_1, %c0_2] : memref<8x256xf32, #tpu.memory_space<vmem>>, vector<8x256xf32>
    %2 = arith.addf %0, %1 : vector<8x256xf32>
    %cst = arith.constant dense<0xFF800000> : vector<8xf32>
    %3 = vector.multi_reduction <maximumf>, %2, %cst [1] : vector<8x256xf32> to vector<8xf32>
    %4 = vector.shape_cast %3 : vector<8xf32> to vector<8x1xf32>
    %5 = vector.broadcast %4 : vector<8x1xf32> to vector<8x256xf32>
    %6 = arith.subf %2, %5 : vector<8x256xf32>
    %7 = math.exp %6 : vector<8x256xf32>
    %cst_3 = arith.constant dense<0.000000e+00> : vector<8xf32>
    %8 = vector.multi_reduction <add>, %7, %cst_3 [1] : vector<8x256xf32> to vector<8xf32>
    %9 = vector.shape_cast %8 : vector<8xf32> to vector<8x1xf32>
    %10 = tpu.reciprocal %9 {approx = true} : vector<8x1xf32> -> vector<8x1xf32>
    %11 = arith.mulf %9, %10 : vector<8x1xf32>
    %cst_4 = arith.constant 2.000000e+00 : f32
    %12 = vector.broadcast %cst_4 : f32 to vector<8x1xf32>
    %13 = arith.subf %12, %11 : vector<8x1xf32>
    %14 = arith.mulf %10, %13 : vector<8x1xf32>
    %15 = vector.broadcast %14 : vector<8x1xf32> to vector<8x256xf32>
    %16 = arith.mulf %7, %15 : vector<8x256xf32>
    %cst_5 = arith.constant 1.000000e+00 : f32
    %17 = vector.broadcast %cst_5 : f32 to vector<8x256xf32>
    %18 = arith.subf %17, %16 : vector<8x256xf32>
    %cst_6 = arith.constant 1.17549435E-38 : f32
    %19 = vector.broadcast %cst_6 : f32 to vector<8x256xf32>
    %20 = arith.maximumf %18, %19 : vector<8x256xf32>
    %21 = math.log %20 : vector<8x256xf32>
    %22 = arith.addf %2, %21 : vector<8x256xf32>
    %cst_7 = arith.constant dense<0xFF800000> : vector<8xf32>
    %23 = vector.multi_reduction <maximumf>, %22, %cst_7 [1] : vector<8x256xf32> to vector<8xf32>
    %24 = vector.shape_cast %23 : vector<8xf32> to vector<8x1xf32>
    %25 = vector.broadcast %24 : vector<8x1xf32> to vector<8x256xf32>
    %26 = arith.subf %22, %25 : vector<8x256xf32>
    %27 = math.exp %26 : vector<8x256xf32>
    %cst_8 = arith.constant dense<0.000000e+00> : vector<8xf32>
    %28 = vector.multi_reduction <add>, %27, %cst_8 [1] : vector<8x256xf32> to vector<8xf32>
    %29 = vector.shape_cast %28 : vector<8xf32> to vector<8x1xf32>
    %30 = tpu.reciprocal %29 {approx = true} : vector<8x1xf32> -> vector<8x1xf32>
    %31 = arith.mulf %29, %30 : vector<8x1xf32>
    %cst_9 = arith.constant 2.000000e+00 : f32
    %32 = vector.broadcast %cst_9 : f32 to vector<8x1xf32>
    %33 = arith.subf %32, %31 : vector<8x1xf32>
    %34 = arith.mulf %30, %33 : vector<8x1xf32>
    %35 = vector.broadcast %34 : vector<8x1xf32> to vector<8x256xf32>
    %36 = arith.mulf %27, %35 : vector<8x256xf32>
    %37 = arith.addf %16, %36 : vector<8x256xf32>
    %cst_10 = arith.constant 1.000000e+00 : f32
    %38 = vector.broadcast %cst_10 : f32 to vector<8x256xf32>
    %39 = arith.subf %38, %36 : vector<8x256xf32>
    %cst_11 = arith.constant 1.17549435E-38 : f32
    %40 = vector.broadcast %cst_11 : f32 to vector<8x256xf32>
    %41 = arith.maximumf %39, %40 : vector<8x256xf32>
    %42 = math.log %41 : vector<8x256xf32>
    %43 = arith.addf %22, %42 : vector<8x256xf32>
    %cst_12 = arith.constant dense<0xFF800000> : vector<8xf32>
    %44 = vector.multi_reduction <maximumf>, %43, %cst_12 [1] : vector<8x256xf32> to vector<8xf32>
    %45 = vector.shape_cast %44 : vector<8xf32> to vector<8x1xf32>
    %46 = vector.broadcast %45 : vector<8x1xf32> to vector<8x256xf32>
    %47 = arith.subf %43, %46 : vector<8x256xf32>
    %48 = math.exp %47 : vector<8x256xf32>
    %cst_13 = arith.constant dense<0.000000e+00> : vector<8xf32>
    %49 = vector.multi_reduction <add>, %48, %cst_13 [1] : vector<8x256xf32> to vector<8xf32>
    %50 = vector.shape_cast %49 : vector<8xf32> to vector<8x1xf32>
    %51 = tpu.reciprocal %50 {approx = true} : vector<8x1xf32> -> vector<8x1xf32>
    %52 = arith.mulf %50, %51 : vector<8x1xf32>
    %cst_14 = arith.constant 2.000000e+00 : f32
    %53 = vector.broadcast %cst_14 : f32 to vector<8x1xf32>
    %54 = arith.subf %53, %52 : vector<8x1xf32>
    %55 = arith.mulf %51, %54 : vector<8x1xf32>
    %56 = vector.broadcast %55 : vector<8x1xf32> to vector<8x256xf32>
    %57 = arith.mulf %48, %56 : vector<8x256xf32>
    %58 = arith.addf %37, %57 : vector<8x256xf32>
    %cst_15 = arith.constant 1.000000e+00 : f32
    %59 = vector.broadcast %cst_15 : f32 to vector<8x256xf32>
    %60 = arith.subf %59, %57 : vector<8x256xf32>
    %cst_16 = arith.constant 1.17549435E-38 : f32
    %61 = vector.broadcast %cst_16 : f32 to vector<8x256xf32>
    %62 = arith.maximumf %60, %61 : vector<8x256xf32>
    %63 = math.log %62 : vector<8x256xf32>
    %64 = arith.addf %43, %63 : vector<8x256xf32>
    %cst_17 = arith.constant dense<0xFF800000> : vector<8xf32>
    %65 = vector.multi_reduction <maximumf>, %64, %cst_17 [1] : vector<8x256xf32> to vector<8xf32>
    %66 = vector.shape_cast %65 : vector<8xf32> to vector<8x1xf32>
    %67 = vector.broadcast %66 : vector<8x1xf32> to vector<8x256xf32>
    %68 = arith.subf %64, %67 : vector<8x256xf32>
    %69 = math.exp %68 : vector<8x256xf32>
    %cst_18 = arith.constant dense<0.000000e+00> : vector<8xf32>
    %70 = vector.multi_reduction <add>, %69, %cst_18 [1] : vector<8x256xf32> to vector<8xf32>
    %71 = vector.shape_cast %70 : vector<8xf32> to vector<8x1xf32>
    %72 = tpu.reciprocal %71 {approx = true} : vector<8x1xf32> -> vector<8x1xf32>
    %73 = arith.mulf %71, %72 : vector<8x1xf32>
    %cst_19 = arith.constant 2.000000e+00 : f32
    %74 = vector.broadcast %cst_19 : f32 to vector<8x1xf32>
    %75 = arith.subf %74, %73 : vector<8x1xf32>
    %76 = arith.mulf %72, %75 : vector<8x1xf32>
    %77 = vector.broadcast %76 : vector<8x1xf32> to vector<8x256xf32>
    %78 = arith.mulf %69, %77 : vector<8x256xf32>
    %79 = arith.addf %58, %78 : vector<8x256xf32>
    %c0_20 = arith.constant 0 : index
    %c0_21 = arith.constant 0 : index
    %80 = vector.load %arg3[%c0_20, %c0_21] : memref<8x256xf32, #tpu.memory_space<vmem>>, vector<8x256xf32>
    tpu.vector_store %arg3[%c0_20, %c0_21], %79 {strides = array<i32>} : memref<8x256xf32, #tpu.memory_space<vmem>>, vector<8x256xf32>,
    return
  }
  func.func @transform_0(%arg0: i32) -> (i32, i32) {
    %c0_i32 = arith.constant 0 : i32
    %c0_i32_0 = arith.constant 0 : i32
    return %arg0, %c0_i32 : i32, i32
  }
  func.func @transform_1(%arg0: i32) -> (i32, i32) {
    %c0_i32 = arith.constant 0 : i32
    %c0_i32_0 = arith.constant 0 : i32
    return %arg0, %c0_i32 : i32, i32
  }
  func.func @transform_2(%arg0: i32) -> (i32, i32) {
    %c0_i32 = arith.constant 0 : i32
    %c0_i32_0 = arith.constant 0 : i32
    return %arg0, %c0_i32 : i32, i32
  }
}

</mosaic_0001>

<llo_original>
// kernel: tpu_custom_call.1
$region0: #{tpu_custom_call.1}
  #allocation0 [shape = 'u32[]', space=smem, size = 0x4, offset = 0x4, fixed_abs, tag = 'smem constant byte address 0x4 - core index']
  #allocation1 [shape = 'u32[144,128]{1,0:T(1,128)}', space=vmem, size = 0x12000, scoped, tag = 'internal scratch']
  %s0 = inlined_call_operand.hbm [shape: f32[8,256], index: 0, kind: input, shape index: {}]
  %s1 = inlined_call_operand.hbm [shape: f32[8,256], index: 1, kind: input, shape index: {}]
  %s2 = inlined_call_operand.hbm [shape: f32[8,256], index: 2, kind: output, shape index: {}]
  %s3 = sld [smem:[#allocation0]]
  $region26: #{tpu_custom_call.1} parent=0
    _
  %s5 = ssub.s32 1, %s3
  %s6 = scalar_select 0, %s5, %s3
  $region1: #{tpu_custom_call.1} parent=0
    #allocation2 [shape = 'u8[8192]{0}', space=vmem, size = 0x2000, scoped, tag = 'input window, operand 0, single buffered']
    #allocation3 [shape = 's32[1]{0}', space=sflag, size = 0x4, scoped, tag = 'scoped memory for tpu_custom_call.1']
    #allocation4 [shape = 's32[1]{0}', space=sflag, size = 0x4, scoped, tag = 'scoped memory for tpu_custom_call.1']
    #allocation5 [shape = 'u8[8192]{0}', space=vmem, size = 0x2000, scoped, tag = 'input window, operand 1, single buffered']
    #allocation6 [shape = 's32[1]{0}', space=sflag, size = 0x4, scoped, tag = 'scoped memory for tpu_custom_call.1']
    #allocation7 [shape = 'u8[8192]{0}', space=vmem, size = 0x2000, scoped, tag = 'output window, operand 0, single buffered']
    %7 = vsyncpa [#allocation3], 0
    %8 = vsyncpa [#allocation6], 0
    %9 = vsyncpa [#allocation4], 0
    // Predicated region
    $region2: #{tpu_custom_call.1} parent=1 // pred_check
      _
    $region3: #{tpu_custom_call.1} parent=1 // pred_check_branch
      %11 = sbr.rel (0) target = $region5
    $region4: #{tpu_custom_call.1} parent=1 // pred_region
      %s13 = ssub.s32 256, 256
      %14 = vsyncadd [#allocation3], %s13
      %s16 = sshll.u32 [#allocation2], 4
      %s17 = int_to_ptr.vmem [resolvable:$true] %s16
      %19 = dma.hbm_to_vmem [thread:$0]  %s0, 256, %s17, [#allocation3]
    $region5: #{tpu_custom_call.1} parent=1 // pred_fallthru
      _
    // Predicated region
    $region6: #{tpu_custom_call.1} parent=1 // pred_check
      _
    $region7: #{tpu_custom_call.1} parent=1 // pred_check_branch
      %21 = sbr.rel (0) target = $region9
    $region8: #{tpu_custom_call.1} parent=1 // pred_region
      %s23 = ssub.s32 256, 256
      %24 = vsyncadd [#allocation6], %s23
      %s26 = sshll.u32 [#allocation5], 4
      %s27 = int_to_ptr.vmem [resolvable:$true] %s26
      %29 = dma.hbm_to_vmem [thread:$0]  %s1, 256, %s27, [#allocation6]
    $region9: #{tpu_custom_call.1} parent=1 // pred_fallthru
      _
    // Predicated region
    $region10: #{tpu_custom_call.1} parent=1 // pred_check
      _
    $region11: #{tpu_custom_call.1} parent=1 // pred_check_branch
      %31 = sbr.rel (0) target = $region13
    $region12: #{tpu_custom_call.1} parent=1 // pred_region
      %32 = dma.done [#allocation3], 256
    $region13: #{tpu_custom_call.1} parent=1 // pred_fallthru
      _
    // Predicated region
    $region14: #{tpu_custom_call.1} parent=1 // pred_check
      _
    $region15: #{tpu_custom_call.1} parent=1 // pred_check_branch
      %34 = sbr.rel (0) target = $region17
    $region16: #{tpu_custom_call.1} parent=1 // pred_region
      %35 = dma.done [#allocation6], 256
    $region17: #{tpu_custom_call.1} parent=1 // pred_fallthru
      _
    %v36 = vld [vmem:[#allocation2] sm:$0xff]
    %v37 = vld [vmem:[#allocation2 + $0x8] sm:$0xff]
    %v38 = vld [vmem:[#allocation5] sm:$0xff]
    %v39 = vld [vmem:[#allocation5 + $0x8] sm:$0xff]
    %v40 = vadd.f32 %v36, %v38
    %v41 = vadd.f32 %v37, %v39
    %v42 = vmax.f32 %v40, %v41
    %43 = vmax.xlane.f32.xlu0 %v42
    %v44 = vpop.xlane.xlu0 %43
    %v45 = vsub.f32 %v40, %v44
    %v46 = vsub.f32 %v41, %v44
    %v47 = vmul.f32 %v45, 1.442695
    %v48 = vpow.pop %v47
    %v49 = vmul.f32 %v46, 1.442695
    %v50 = vpow.pop %v49
    %v51 = vadd.f32 %v48, %v50
    %52 = vadd.xlane.f32.xlu0 %v51
    %v53 = vpop.xlane.xlu0 %52
    %v54 = vrcp.pop %v53
    %v55 = vmul.f32 %v53, %v54
    %v56 = vsub.f32 2.0, %v55
    %v57 = vmul.f32 %v54, %v56
    %v58 = vmul.f32 %v48, %v57
    %v59 = vmul.f32 %v50, %v57
    %v60 = vsub.f32 1.0, %v58
    %v61 = vsub.f32 1.0, %v59
    %v62 = vmax.f32 %v60, 1.1754944e-38
    %v63 = vmax.f32 %v61, 1.1754944e-38
    %v64 = vlog2.pop %v62
    %v65 = vmul.f32 %v64, 0.6931472
    %v66 = vlog2.pop %v63
    %v67 = vmul.f32 %v66, 0.6931472
    %v68 = vadd.f32 %v40, %v65
    %v69 = vadd.f32 %v41, %v67
    %v70 = vmax.f32 %v68, %v69
    %71 = vmax.xlane.f32.xlu0 %v70
    %v72 = vpop.xlane.xlu0 %71
    %v73 = vsub.f32 %v68, %v72
    %v74 = vsub.f32 %v69, %v72
    %v75 = vmul.f32 %v73, 1.442695
    %v76 = vpow.pop %v75
    %v77 = vmul.f32 %v74, 1.442695
    %v78 = vpow.pop %v77
    %v79 = vadd.f32 %v76, %v78
    %80 = vadd.xlane.f32.xlu0 %v79
    %v81 = vpop.xlane.xlu0 %80
    %v82 = vrcp.pop %v81
    %v83 = vmul.f32 %v81, %v82
    %v84 = vsub.f32 2.0, %v83
    %v85 = vmul.f32 %v82, %v84
    %v86 = vmul.f32 %v76, %v85
    %v87 = vmul.f32 %v78, %v85
    %v88 = vadd.f32 %v58, %v86
    %v89 = vadd.f32 %v59, %v87
    %v90 = vsub.f32 1.0, %v86
    %v91 = vsub.f32 1.0, %v87
    %v92 = vmax.f32 %v90, 1.1754944e-38
    %v93 = vmax.f32 %v91, 1.1754944e-38
    %v94 = vlog2.pop %v92
    %v95 = vmul.f32 %v94, 0.6931472
    %v96 = vlog2.pop %v93
    %v97 = vmul.f32 %v96, 0.6931472
    %v98 = vadd.f32 %v68, %v95
    %v99 = vadd.f32 %v69, %v97
    %v100 = vmax.f32 %v98, %v99
    %101 = vmax.xlane.f32.xlu0 %v100
    %v102 = vpop.xlane.xlu0 %101
    %v103 = vsub.f32 %v98, %v102
    %v104 = vsub.f32 %v99, %v102
    %v105 = vmul.f32 %v103, 1.442695
    %v106 = vpow.pop %v105
    %v107 = vmul.f32 %v104, 1.442695
    %v108 = vpow.pop %v107
    %v109 = vadd.f32 %v106, %v108
    %110 = vadd.xlane.f32.xlu0 %v109
    %v111 = vpop.xlane.xlu0 %110
    %v112 = vrcp.pop %v111
    %v113 = vmul.f32 %v111, %v112
    %v114 = vsub.f32 2.0, %v113
    %v115 = vmul.f32 %v112, %v114
    %v116 = vmul.f32 %v106, %v115
    %v117 = vmul.f32 %v108, %v115
    %v118 = vadd.f32 %v88, %v116
    %v119 = vadd.f32 %v89, %v117
    %v120 = vsub.f32 1.0, %v116
    %v121 = vsub.f32 1.0, %v117
    %v122 = vmax.f32 %v120, 1.1754944e-38
    %v123 = vmax.f32 %v121, 1.1754944e-38
    %v124 = vlog2.pop %v122
    %v125 = vmul.f32 %v124, 0.6931472
    %v126 = vlog2.pop %v123
    %v127 = vmul.f32 %v126, 0.6931472
    %v128 = vadd.f32 %v98, %v125
    %v129 = vadd.f32 %v99, %v127
    %v130 = vmax.f32 %v128, %v129
    %131 = vmax.xlane.f32.xlu0 %v130
    %v132 = vpop.xlane.xlu0 %131
    %v133 = vsub.f32 %v128, %v132
    %v134 = vsub.f32 %v129, %v132
    %v135 = vmul.f32 %v133, 1.442695
    %v136 = vpow.pop %v135
    %v137 = vmul.f32 %v134, 1.442695
    %v138 = vpow.pop %v137
    %v139 = vadd.f32 %v136, %v138
    %140 = vadd.xlane.f32.xlu0 %v139
    %v141 = vpop.xlane.xlu0 %140
    %v142 = vrcp.pop %v141
    %v143 = vmul.f32 %v141, %v142
    %v144 = vsub.f32 2.0, %v143
    %v145 = vmul.f32 %v142, %v144
    %v146 = vmul.f32 %v136, %v145
    %v147 = vmul.f32 %v138, %v145
    %v148 = vadd.f32 %v118, %v146
    %v149 = vadd.f32 %v119, %v147
    %150 = vst [vmem:[#allocation7] sm:$0xff] %v148
    %151 = vst [vmem:[#allocation7 + $0x8] sm:$0xff] %v149
    // Predicated region
    $region18: #{tpu_custom_call.1} parent=1 // pred_check
      _
    $region19: #{tpu_custom_call.1} parent=1 // pred_check_branch
      %153 = sbr.rel (0) target = $region21
    $region20: #{tpu_custom_call.1} parent=1 // pred_region
      %s155 = ssub.s32 256, 256
      %156 = vsyncadd [#allocation4], %s155
      %s158 = sshll.u32 [#allocation7], 4
      %s159 = int_to_ptr.vmem [resolvable:$true] %s158
      %161 = dma.vmem_to_hbm [thread:$0]  %s159, 256, %s2, [#allocation4]
    $region21: #{tpu_custom_call.1} parent=1 // pred_fallthru
      _
    // Predicated region
    $region22: #{tpu_custom_call.1} parent=1 // pred_check
      _
    $region23: #{tpu_custom_call.1} parent=1 // pred_check_branch
      %163 = sbr.rel (0) target = $region25
    $region24: #{tpu_custom_call.1} parent=1 // pred_region
      %164 = dma.done [#allocation4], 256
    $region25: #{tpu_custom_call.1} parent=1 // pred_fallthru
      _
    %165 = vsyncpa [#allocation3], 1
    %166 = vsyncpa [#allocation6], 1
    %167 = vsyncpa [#allocation4], 1

</llo_original>
